<compile_context>
chip_gen: v5e
topology: v5e:2x2
jax: 0.10.0
libtpu: 0.0.40
codegen_flags: <defaults>
</compile_context>

<pallas_src>
import functools

import jax
import jax.numpy as jnp
from jax import lax
from jax.experimental import pallas as pl
from jax.experimental.pallas import tpu as pltpu

EPS = 1e-6   # F.pairwise_distance default eps (added to the difference)
BIG = 1e30   # baked into ||w||^2 of padded speaker columns -> scores ~ -1e15,
             # which underflows in exp(); removes the per-tile column mask.


def _round_up(x, m):
    return ((x + m - 1) // m) * m


def _prototypical_kernel(x_ref, w_ref, wsq_ref, lbl_ref, scores_ref, lpart_ref,
                         *, tn, n_valid):
    # x_ref:   (TN, D)     f32 embedding tile (double-buffered)
    # w_ref:   (D, S_pad)  f32 prototypes, resident (single-buffered)
    # wsq_ref: (1, S_pad)  f32 ||w_s||^2, +BIG on padded columns (resident)
    # lbl_ref: (TN, 1)     i32 labels tile
    xe = x_ref[...] + EPS                       # eps folded in-kernel; D unpadded
    w = w_ref[...]

    # Squared L2 distance via the matmul expansion; cross term on the MXU.
    x_sq = jnp.sum(xe * xe, axis=1, keepdims=True)                   # (TN, 1)
    cross = jnp.dot(xe, w, preferred_element_type=jnp.float32)       # (TN, S_pad)
    d2 = jnp.maximum(x_sq + wsq_ref[...] - 2.0 * cross, 0.0)
    scores = -jnp.sqrt(d2)                                           # (TN, S_pad)
    scores_ref[...] = scores

    # Fused cross-entropy.  Padded speaker columns already sit at ~-1e15 (the
    # +BIG bake-in), so exp underflows to 0 — no explicit column-mask pass.
    m = jnp.max(scores, axis=1, keepdims=True)                       # (TN, 1)
    lse = m + jnp.log(jnp.sum(jnp.exp(scores - m), axis=1, keepdims=True))
    col_ids = lax.broadcasted_iota(jnp.int32, scores.shape, 1)       # (TN, S_pad)
    onehot = (col_ids == lbl_ref[...]).astype(jnp.float32)
    correct = jnp.sum(scores * onehot, axis=1, keepdims=True)        # (TN, 1)
    per_sample = lse - correct                                       # (TN, 1)

    # Batch-padding rows only exist when N % TN != 0; emit mask code only then.
    if n_valid % tn != 0:
        row_ids = (pl.program_id(0) * tn
                   + lax.broadcasted_iota(jnp.int32, (tn, 1), 0))
        per_sample = jnp.where(row_ids < n_valid, per_sample, 0.0)

    tile_sum = jnp.sum(per_sample)
    lpart_ref[...] = jnp.broadcast_to(tile_sum, (1, 8, 128)).astype(jnp.float32)


def prototypical_forward(net_out, w, label, *, block_n=256):
    """net_out: (N, repr_dim) f32, w: (repr_dim, num_spkr) f32, label: (N,) int.
    Returns (scores (N, num_spkr) f32, loss () f32)."""
    N, D = net_out.shape
    D2, S = w.shape
    assert D == D2

    x = net_out.astype(jnp.float32)
    w = w.astype(jnp.float32)

    s_pad = _round_up(S, 128)                    # lane-dense scores / MXU N dim
    tn = _round_up(min(block_n, N), 8)           # batch tile (sublane multiple)
    n_pad = _round_up(N, tn)
    g = n_pad // tn

    # Parameter prep: pad speakers and bake the padded-column mask into
    # ||w||^2.  (In a training loop, do this once outside the step — w is a
    # parameter; it is kept in the wrapper here only to stay self-contained.)
    w_p = jnp.pad(w, ((0, 0), (0, s_pad - S))) if s_pad != S else w
    w_sq = jnp.sum(w_p * w_p, axis=0, keepdims=True)                 # (1, S_pad)
    if s_pad != S:
        w_sq = jnp.where((jnp.arange(s_pad) >= S)[None, :], BIG, w_sq)

    x_p = jnp.pad(x, ((0, n_pad - N), (0, 0))) if n_pad != N else x
    lbl = label.reshape(-1).astype(jnp.int32)
    lbl = (jnp.pad(lbl, (0, n_pad - N)) if n_pad != N else lbl).reshape(n_pad, 1)

    # Explicit VMEM budget: double-buffered x / scores / label tiles, resident
    # single-buffered w / ||w||^2, epilogue temporaries, plus slack.  v5e's
    # scoped default (16 MiB) is too small for resident w at moderate S.
    vmem_need = 4 * (2 * tn * D + 2 * tn * s_pad + D * s_pad + s_pad + 2 * tn)
    vmem_need += 4 * 4 * tn * s_pad              # epilogue temporaries (~4 passes)
    vmem_limit = int(min(max(vmem_need + (4 << 20), 32 << 20), 64 << 20))

    kernel = functools.partial(_prototypical_kernel, tn=tn, n_valid=N)

    def run(resident_pipeline_mode):
        resident_kw = ({"pipeline_mode": resident_pipeline_mode}
                       if resident_pipeline_mode is not None else {})
        return pl.pallas_call(
            kernel,
            grid=(g,),
            in_specs=[
                pl.BlockSpec((tn, D), lambda i: (i, 0)),              # net_out tile
                pl.BlockSpec((D, s_pad), lambda i: (0, 0),
                             **resident_kw),                          # w, resident
                pl.BlockSpec((1, s_pad), lambda i: (0, 0),
                             **resident_kw),                          # ||w||^2
                pl.BlockSpec((tn, 1), lambda i: (i, 0)),              # labels tile
            ],
            out_specs=(
                pl.BlockSpec((tn, s_pad), lambda i: (i, 0)),          # scores tile
                pl.BlockSpec((1, 8, 128), lambda i: (i, 0, 0)),       # loss partial
            ),
            out_shape=(
                jax.ShapeDtypeStruct((n_pad, s_pad), jnp.float32),
                jax.ShapeDtypeStruct((g, 8, 128), jnp.float32),
            ),
            compiler_params=pltpu.CompilerParams(
                dimension_semantics=("parallel",),
                vmem_limit_bytes=vmem_limit),
        )(x_p, w_p, w_sq, lbl)

    try:
        # Grid-invariant operands: single-buffer to halve their VMEM footprint.
        scores_p, lparts = run(pl.Buffered(1))
    except Exception:
        # Fallback for Pallas builds that reject Buffered(1) on a pallas_call
        # BlockSpec — identical semantics, just default double-buffering.
        scores_p, lparts = run(None)

    scores = scores_p[:N, :S] if (n_pad != N or s_pad != S) else scores_p
    loss = jnp.sum(lparts[:, 0, 0]) / N
    return scores, loss


def _reference(net_out, w, label):
    # Pure-JAX reference mirroring the PyTorch forward (broadcasted 3D diff).
    diff = net_out[:, :, None] - w[None, :, :] + EPS        # (N, D, S)
    scores = -jnp.sqrt(jnp.sum(diff * diff, axis=1))        # (N, S)
    lse = jax.nn.logsumexp(scores, axis=1)
    correct = jnp.take_along_axis(scores, label[:, None], axis=1)[:, 0]
    loss = jnp.mean(lse - correct)
    return scores, loss


if __name__ == "__main__":
    # Small, deterministic example consistent with the module's forward.
    N, repr_dim, num_spkr = 8, 32, 16

    key = jax.random.PRNGKey(0)
    k_x, k_w, k_l = jax.random.split(key, 3)

    net_out = jax.random.normal(k_x, (N, repr_dim), dtype=jnp.float32)

    # xavier_normal_(zeros((repr_dim, num_spkr)), gain=1):
    # std = gain * sqrt(2 / (fan_in + fan_out)).
    std = (2.0 / (repr_dim + num_spkr)) ** 0.5
    w = std * jax.random.normal(k_w, (repr_dim, num_spkr), dtype=jnp.float32)

    label = jax.random.randint(k_l, (N,), 0, num_spkr, dtype=jnp.int32)

    scores, loss = prototypical_forward(net_out, w, label)
    jax.block_until_ready((scores, loss))

    ref_scores, ref_loss = _reference(net_out, w, label)
    assert jnp.allclose(scores, ref_scores, atol=1e-4, rtol=1e-4)
    assert jnp.allclose(loss, ref_loss, atol=1e-4, rtol=1e-4)

    print("KERNEL_OK")
</pallas_src>

<mosaic_0001>
module attributes {stable_mosaic.version = 11 : i64} {
  func.func @_prototypical_kernel(%arg0: i32, %arg1: memref<8x32xf32, #tpu.memory_space<vmem>>, %arg2: memref<32x128xf32, #tpu.memory_space<vmem>>, %arg3: memref<1x128xf32, #tpu.memory_space<vmem>>, %arg4: memref<8x1xi32, #tpu.memory_space<vmem>>, %arg5: memref<8x128xf32, #tpu.memory_space<vmem>>, %arg6: memref<1x8x128xf32, #tpu.memory_space<vmem>>) attributes {dimension_semantics = [#tpu.dimension_semantics<parallel>], iteration_bounds = array<i64: 1>, scalar_prefetch = 0 : i64, scratch_operands = 0 : i64, tpu.core_type = #tpu.core_type<tc>, window_params = [{transform_indices = @transform_0, window_bounds = array<i64: 8, 32>}, {pipeline_mode = #tpu.pipeline_mode<synchronous>, transform_indices = @transform_1, window_bounds = array<i64: 32, 128>}, {pipeline_mode = #tpu.pipeline_mode<synchronous>, transform_indices = @transform_2, window_bounds = array<i64: 1, 128>}, {transform_indices = @transform_3, window_bounds = array<i64: 8, 1>}, {transform_indices = @transform_4, window_bounds = array<i64: 8, 128>}, {transform_indices = @transform_5, window_bounds = array<i64: 1, 8, 128>}]} {
    %c0 = arith.constant 0 : index
    %c0_0 = arith.constant 0 : index
    %0 = vector.load %arg1[%c0, %c0_0] : memref<8x32xf32, #tpu.memory_space<vmem>>, vector<8x32xf32>
    %cst = arith.constant 9.99999997E-7 : f32
    %1 = vector.broadcast %cst : f32 to vector<8x32xf32>
    %2 = arith.addf %0, %1 : vector<8x32xf32>
    %c0_1 = arith.constant 0 : index
    %c0_2 = arith.constant 0 : index
    %3 = vector.load %arg2[%c0_1, %c0_2] : memref<32x128xf32, #tpu.memory_space<vmem>>, vector<32x128xf32>
    %4 = arith.mulf %2, %2 : vector<8x32xf32>
    %cst_3 = arith.constant dense<0.000000e+00> : vector<8xf32>
    %5 = vector.multi_reduction <add>, %4, %cst_3 [1] : vector<8x32xf32> to vector<8xf32>
    %6 = vector.shape_cast %5 : vector<8xf32> to vector<8x1xf32>
    %cst_4 = arith.constant dense<0.000000e+00> : vector<8x128xf32>
    %7 = tpu.matmul %2, %3, %cst_4 {dimension_numbers = #tpu.dot_dimension_numbers<[1], [0], [0], [1], [0, 0, 1, 1], [], []>} : vector<8x32xf32>, vector<32x128xf32>, vector<8x128xf32> -> vector<8x128xf32>
    %c0_5 = arith.constant 0 : index
    %c0_6 = arith.constant 0 : index
    %8 = vector.load %arg3[%c0_5, %c0_6] : memref<1x128xf32, #tpu.memory_space<vmem>>, vector<1x128xf32>
    %9 = vector.broadcast %6 : vector<8x1xf32> to vector<8x128xf32>
    %10 = vector.broadcast %8 : vector<1x128xf32> to vector<8x128xf32>
    %11 = arith.addf %9, %10 : vector<8x128xf32>
    %cst_7 = arith.constant 2.000000e+00 : f32
    %12 = vector.broadcast %cst_7 : f32 to vector<8x128xf32>
    %13 = arith.mulf %12, %7 : vector<8x128xf32>
    %14 = arith.subf %11, %13 : vector<8x128xf32>
    %cst_8 = arith.constant 0.000000e+00 : f32
    %15 = vector.broadcast %cst_8 : f32 to vector<8x128xf32>
    %16 = arith.maximumf %14, %15 : vector<8x128xf32>
    %17 = math.sqrt %16 : vector<8x128xf32>
    %cst_9 = arith.constant 0.000000e+00 : f32
    %18 = vector.broadcast %cst_9 : f32 to vector<8x128xf32>
    %19 = arith.subf %18, %17 : vector<8x128xf32>
    %c0_10 = arith.constant 0 : index
    %c0_11 = arith.constant 0 : index
    %20 = vector.load %arg5[%c0_10, %c0_11] : memref<8x128xf32, #tpu.memory_space<vmem>>, vector<8x128xf32>
    tpu.vector_store %arg5[%c0_10, %c0_11], %19 {strides = array<i32>} : memref<8x128xf32, #tpu.memory_space<vmem>>, vector<8x128xf32>,
    %cst_12 = arith.constant dense<0xFF800000> : vector<8xf32>
    %21 = vector.multi_reduction <maximumf>, %19, %cst_12 [1] : vector<8x128xf32> to vector<8xf32>
    %22 = vector.shape_cast %21 : vector<8xf32> to vector<8x1xf32>
    %23 = vector.broadcast %22 : vector<8x1xf32> to vector<8x128xf32>
    %24 = arith.subf %19, %23 : vector<8x128xf32>
    %25 = math.exp %24 : vector<8x128xf32>
    %cst_13 = arith.constant dense<0.000000e+00> : vector<8xf32>
    %26 = vector.multi_reduction <add>, %25, %cst_13 [1] : vector<8x128xf32> to vector<8xf32>
    %27 = vector.shape_cast %26 : vector<8xf32> to vector<8x1xf32>
    %28 = math.log %27 : vector<8x1xf32>
    %29 = arith.addf %22, %28 : vector<8x1xf32>
    %30 = tpu.iota {dimensions = array<i32: 1>} : vector<8x128xi32>
    %c0_14 = arith.constant 0 : index
    %c0_15 = arith.constant 0 : index
    %31 = vector.load %arg4[%c0_14, %c0_15] : memref<8x1xi32, #tpu.memory_space<vmem>>, vector<8x1xi32>
    %32 = vector.broadcast %31 : vector<8x1xi32> to vector<8x128xi32>
    %33 = arith.cmpi eq, %30, %32 : vector<8x128xi32>
    %34 = arith.extui %33 : vector<8x128xi1> to vector<8x128xi32>
    %35 = arith.sitofp %34 : vector<8x128xi32> to vector<8x128xf32>
    %36 = arith.mulf %19, %35 : vector<8x128xf32>
    %cst_16 = arith.constant dense<0.000000e+00> : vector<8xf32>
    %37 = vector.multi_reduction <add>, %36, %cst_16 [1] : vector<8x128xf32> to vector<8xf32>
    %38 = vector.shape_cast %37 : vector<8xf32> to vector<8x1xf32>
    %39 = arith.subf %29, %38 : vector<8x1xf32>
    %40 = vector.shape_cast %39 : vector<8x1xf32> to vector<1x8x1xf32>
    %cst_17 = arith.constant dense<0.000000e+00> : vector<1xf32>
    %41 = vector.multi_reduction <add>, %40, %cst_17 [1, 2] : vector<1x8x1xf32> to vector<1xf32>
    %42 = vector.shape_cast %41 : vector<1xf32> to vector<1x1x1xf32>
    %43 = vector.extract %42[0, 0, 0] : f32 from vector<1x1x1xf32>
    %44 = vector.broadcast %43 : f32 to vector<1x8x128xf32>
    %c0_18 = arith.constant 0 : index
    %c0_19 = arith.constant 0 : index
    %c0_20 = arith.constant 0 : index
    %45 = vector.load %arg6[%c0_18, %c0_19, %c0_20] : memref<1x8x128xf32, #tpu.memory_space<vmem>>, vector<1x8x128xf32>
    tpu.vector_store %arg6[%c0_18, %c0_19, %c0_20], %44 {strides = array<i32>} : memref<1x8x128xf32, #tpu.memory_space<vmem>>, vector<1x8x128xf32>,
    return
  }
  func.func @transform_0(%arg0: i32) -> (i32, i32) {
    %c0_i32 = arith.constant 0 : i32
    %c0_i32_0 = arith.constant 0 : i32
    return %arg0, %c0_i32 : i32, i32
  }
  func.func @transform_1(%arg0: i32) -> (i32, i32) {
    %c0_i32 = arith.constant 0 : i32
    %c0_i32_0 = arith.constant 0 : i32
    %c0_i32_1 = arith.constant 0 : i32
    return %c0_i32, %c0_i32_0 : i32, i32
  }
  func.func @transform_2(%arg0: i32) -> (i32, i32) {
    %c0_i32 = arith.constant 0 : i32
    %c0_i32_0 = arith.constant 0 : i32
    %c0_i32_1 = arith.constant 0 : i32
    return %c0_i32, %c0_i32_0 : i32, i32
  }
  func.func @transform_3(%arg0: i32) -> (i32, i32) {
    %c0_i32 = arith.constant 0 : i32
    %c0_i32_0 = arith.constant 0 : i32
    return %arg0, %c0_i32 : i32, i32
  }
  func.func @transform_4(%arg0: i32) -> (i32, i32) {
    %c0_i32 = arith.constant 0 : i32
    %c0_i32_0 = arith.constant 0 : i32
    return %arg0, %c0_i32 : i32, i32
  }
  func.func @transform_5(%arg0: i32) -> (i32, i32, i32) {
    %c0_i32 = arith.constant 0 : i32
    %c0_i32_0 = arith.constant 0 : i32
    %c0_i32_1 = arith.constant 0 : i32
    return %arg0, %c0_i32, %c0_i32_0 : i32, i32, i32
  }
}

module attributes {stable_mosaic.version = 11 : i64} {
  func.func @_prototypical_kernel(%arg0: i32, %arg1: memref<8x32xf32, #tpu.memory_space<vmem>>, %arg2: memref<32x128xf32, #tpu.memory_space<vmem>>, %arg3: memref<1x128xf32, #tpu.memory_space<vmem>>, %arg4: memref<8x1xi32, #tpu.memory_space<vmem>>, %arg5: memref<8x128xf32, #tpu.memory_space<vmem>>, %arg6: memref<1x8x128xf32, #tpu.memory_space<vmem>>) attributes {dimension_semantics = [#tpu.dimension_semantics<parallel>], iteration_bounds = array<i64: 1>, scalar_prefetch = 0 : i64, scratch_operands = 0 : i64, tpu.core_type = #tpu.core_type<tc>, window_params = [{transform_indices = @transform_0, window_bounds = array<i64: 8, 32>}, {pipeline_mode = #tpu.pipeline_mode<synchronous>, transform_indices = @transform_1, window_bounds = array<i64: 32, 128>}, {pipeline_mode = #tpu.pipeline_mode<synchronous>, transform_indices = @transform_2, window_bounds = array<i64: 1, 128>}, {transform_indices = @transform_3, window_bounds = array<i64: 8, 1>}, {transform_indices = @transform_4, window_bounds = array<i64: 8, 128>}, {transform_indices = @transform_5, window_bounds = array<i64: 1, 8, 128>}]} {
    %c0 = arith.constant 0 : index
    %c0_0 = arith.constant 0 : index
    %0 = vector.load %arg1[%c0, %c0_0] : memref<8x32xf32, #tpu.memory_space<vmem>>, vector<8x32xf32>
    %cst = arith.constant 9.99999997E-7 : f32
    %1 = vector.broadcast %cst : f32 to vector<8x32xf32>
    %2 = arith.addf %0, %1 : vector<8x32xf32>
    %c0_1 = arith.constant 0 : index
    %c0_2 = arith.constant 0 : index
    %3 = vector.load %arg2[%c0_1, %c0_2] : memref<32x128xf32, #tpu.memory_space<vmem>>, vector<32x128xf32>
    %4 = arith.mulf %2, %2 : vector<8x32xf32>
    %cst_3 = arith.constant dense<0.000000e+00> : vector<8xf32>
    %5 = vector.multi_reduction <add>, %4, %cst_3 [1] : vector<8x32xf32> to vector<8xf32>
    %6 = vector.shape_cast %5 : vector<8xf32> to vector<8x1xf32>
    %cst_4 = arith.constant dense<0.000000e+00> : vector<8x128xf32>
    %7 = tpu.matmul %2, %3, %cst_4 {dimension_numbers = #tpu.dot_dimension_numbers<[1], [0], [0], [1], [0, 0, 1, 1], [], []>} : vector<8x32xf32>, vector<32x128xf32>, vector<8x128xf32> -> vector<8x128xf32>
    %c0_5 = arith.constant 0 : index
    %c0_6 = arith.constant 0 : index
    %8 = vector.load %arg3[%c0_5, %c0_6] : memref<1x128xf32, #tpu.memory_space<vmem>>, vector<1x128xf32>
    %9 = vector.broadcast %6 : vector<8x1xf32> to vector<8x128xf32>
    %10 = vector.broadcast %8 : vector<1x128xf32> to vector<8x128xf32>
    %11 = arith.addf %9, %10 : vector<8x128xf32>
    %cst_7 = arith.constant 2.000000e+00 : f32
    %12 = vector.broadcast %cst_7 : f32 to vector<8x128xf32>
    %13 = arith.mulf %12, %7 : vector<8x128xf32>
    %14 = arith.subf %11, %13 : vector<8x128xf32>
    %cst_8 = arith.constant 0.000000e+00 : f32
    %15 = vector.broadcast %cst_8 : f32 to vector<8x128xf32>
    %16 = arith.maximumf %14, %15 : vector<8x128xf32>
    %17 = math.sqrt %16 : vector<8x128xf32>
    %cst_9 = arith.constant 0.000000e+00 : f32
    %18 = vector.broadcast %cst_9 : f32 to vector<8x128xf32>
    %19 = arith.subf %18, %17 : vector<8x128xf32>
    %c0_10 = arith.constant 0 : index
    %c0_11 = arith.constant 0 : index
    %20 = vector.load %arg5[%c0_10, %c0_11] : memref<8x128xf32, #tpu.memory_space<vmem>>, vector<8x128xf32>
    tpu.vector_store %arg5[%c0_10, %c0_11], %19 {strides = array<i32>} : memref<8x128xf32, #tpu.memory_space<vmem>>, vector<8x128xf32>,
    %cst_12 = arith.constant dense<0xFF800000> : vector<8xf32>
    %21 = vector.multi_reduction <maximumf>, %19, %cst_12 [1] : vector<8x128xf32> to vector<8xf32>
    %22 = vector.shape_cast %21 : vector<8xf32> to vector<8x1xf32>
    %23 = vector.broadcast %22 : vector<8x1xf32> to vector<8x128xf32>
    %24 = arith.subf %19, %23 : vector<8x128xf32>
    %25 = math.exp %24 : vector<8x128xf32>
    %cst_13 = arith.constant dense<0.000000e+00> : vector<8xf32>
    %26 = vector.multi_reduction <add>, %25, %cst_13 [1] : vector<8x128xf32> to vector<8xf32>
    %27 = vector.shape_cast %26 : vector<8xf32> to vector<8x1xf32>
    %28 = math.log %27 : vector<8x1xf32>
    %29 = arith.addf %22, %28 : vector<8x1xf32>
    %30 = tpu.iota {dimensions = array<i32: 1>} : vector<8x128xi32>
    %c0_14 = arith.constant 0 : index
    %c0_15 = arith.constant 0 : index
    %31 = vector.load %arg4[%c0_14, %c0_15] : memref<8x1xi32, #tpu.memory_space<vmem>>, vector<8x1xi32>
    %32 = vector.broadcast %31 : vector<8x1xi32> to vector<8x128xi32>
    %33 = arith.cmpi eq, %30, %32 : vector<8x128xi32>
    %34 = arith.extui %33 : vector<8x128xi1> to vector<8x128xi32>
    %35 = arith.sitofp %34 : vector<8x128xi32> to vector<8x128xf32>
    %36 = arith.mulf %19, %35 : vector<8x128xf32>
    %cst_16 = arith.constant dense<0.000000e+00> : vector<8xf32>
    %37 = vector.multi_reduction <add>, %36, %cst_16 [1] : vector<8x128xf32> to vector<8xf32>
    %38 = vector.shape_cast %37 : vector<8xf32> to vector<8x1xf32>
    %39 = arith.subf %29, %38 : vector<8x1xf32>
    %40 = vector.shape_cast %39 : vector<8x1xf32> to vector<1x8x1xf32>
    %cst_17 = arith.constant dense<0.000000e+00> : vector<1xf32>
    %41 = vector.multi_reduction <add>, %40, %cst_17 [1, 2] : vector<1x8x1xf32> to vector<1xf32>
    %42 = vector.shape_cast %41 : vector<1xf32> to vector<1x1x1xf32>
    %43 = vector.extract %42[0, 0, 0] : f32 from vector<1x1x1xf32>
    %44 = vector.broadcast %43 : f32 to vector<1x8x128xf32>
    %c0_18 = arith.constant 0 : index
    %c0_19 = arith.constant 0 : index
    %c0_20 = arith.constant 0 : index
    %45 = vector.load %arg6[%c0_18, %c0_19, %c0_20] : memref<1x8x128xf32, #tpu.memory_space<vmem>>, vector<1x8x128xf32>
    tpu.vector_store %arg6[%c0_18, %c0_19, %c0_20], %44 {strides = array<i32>} : memref<1x8x128xf32, #tpu.memory_space<vmem>>, vector<1x8x128xf32>,
    return
  }
  func.func @transform_0(%arg0: i32) -> (i32, i32) {
    %c0_i32 = arith.constant 0 : i32
    %c0_i32_0 = arith.constant 0 : i32
    return %arg0, %c0_i32 : i32, i32
  }
  func.func @transform_1(%arg0: i32) -> (i32, i32) {
    %c0_i32 = arith.constant 0 : i32
    %c0_i32_0 = arith.constant 0 : i32
    %c0_i32_1 = arith.constant 0 : i32
    return %c0_i32, %c0_i32_0 : i32, i32
  }
  func.func @transform_2(%arg0: i32) -> (i32, i32) {
    %c0_i32 = arith.constant 0 : i32
    %c0_i32_0 = arith.constant 0 : i32
    %c0_i32_1 = arith.constant 0 : i32
    return %c0_i32, %c0_i32_0 : i32, i32
  }
  func.func @transform_3(%arg0: i32) -> (i32, i32) {
    %c0_i32 = arith.constant 0 : i32
    %c0_i32_0 = arith.constant 0 : i32
    return %arg0, %c0_i32 : i32, i32
  }
  func.func @transform_4(%arg0: i32) -> (i32, i32) {
    %c0_i32 = arith.constant 0 : i32
    %c0_i32_0 = arith.constant 0 : i32
    return %arg0, %c0_i32 : i32, i32
  }
  func.func @transform_5(%arg0: i32) -> (i32, i32, i32) {
    %c0_i32 = arith.constant 0 : i32
    %c0_i32_0 = arith.constant 0 : i32
    %c0_i32_1 = arith.constant 0 : i32
    return %arg0, %c0_i32, %c0_i32_0 : i32, i32, i32
  }
}

</mosaic_0001>

<llo_original>
// kernel: tpu_custom_call.1
$region0: #{tpu_custom_call.1}
  #allocation0 [shape = 'u32[]', space=smem, size = 0x4, offset = 0x4, fixed_abs, tag = 'smem constant byte address 0x4 - core index']
  #allocation1 [shape = 'u32[72,128]{1,0:T(1,128)}', space=vmem, size = 0x9000, scoped, tag = 'internal scratch']
  %s0 = inlined_call_operand.vmem [shape: f32[8,32], index: 0, kind: input, shape index: {}]
  %s1 = inlined_call_operand.hbm [shape: f32[32,128], index: 1, kind: input, shape index: {}]
  %s2 = inlined_call_operand.vmem [shape: f32[1,128], index: 2, kind: input, shape index: {}]
  %s3 = inlined_call_operand.vmem [shape: s32[8,1], index: 3, kind: input, shape index: {}]
  %s4 = inlined_call_operand.hbm [shape: f32[8,128], index: 4, kind: output, shape index: {0}]
  %s5 = inlined_call_operand.hbm [shape: f32[1,8,128], index: 5, kind: output, shape index: {1}]
  %6 = xla_tuple %s4, %s5
  %s7 = sld [smem:[#allocation0]]
  $region38: #{tpu_custom_call.1} parent=0
    _
  %s9 = ssub.s32 1, %s7
  %s10 = scalar_select 0, %s9, %s7
  $region1: #{tpu_custom_call.1} parent=0
    #allocation2 [shape = 'u8[16384]{0}', space=vmem, size = 0x4000, scoped, tag = 'input window, operand 1, single buffered']
    #allocation3 [shape = 's32[1]{0}', space=sflag, size = 0x4, scoped, tag = 'scoped memory for tpu_custom_call.1']
    #allocation4 [shape = 's32[1]{0}', space=sflag, size = 0x4, scoped, tag = 'scoped memory for tpu_custom_call.1']
    #allocation5 [shape = 'u8[4096]{0}', space=vmem, size = 0x1000, scoped, tag = 'output window, operand 0, single buffered']
    #allocation6 [shape = 'u8[4096]{0}', space=vmem, size = 0x1000, scoped, tag = 'output window, operand 1, single buffered']
    #allocation7 [shape = 's32[1]{0}', space=sflag, size = 0x4, scoped, tag = 'scoped memory for tpu_custom_call.1']
    %11 = vsyncpa [#allocation3], 0
    %12 = vsyncpa [#allocation4], 0
    %13 = vsyncpa [#allocation7], 0
    // Predicated region
    $region2: #{tpu_custom_call.1} parent=1 // pred_check
      _
    $region3: #{tpu_custom_call.1} parent=1 // pred_check_branch
      %15 = sbr.rel (0) target = $region5
    $region4: #{tpu_custom_call.1} parent=1 // pred_region
      _
    $region5: #{tpu_custom_call.1} parent=1 // pred_fallthru
      _
    // Predicated region
    $region6: #{tpu_custom_call.1} parent=1 // pred_check
      _
    $region7: #{tpu_custom_call.1} parent=1 // pred_check_branch
      %17 = sbr.rel (0) target = $region9
    $region8: #{tpu_custom_call.1} parent=1 // pred_region
      %19 = vsyncadd [#allocation3], 0
      %s20 = sshll.u32 %s1, 4
      %s21 = int_to_ptr.hbm [resolvable:$true] %s20
      %s22 = sshll.u32 [#allocation2], 4
      %s23 = int_to_ptr.vmem [resolvable:$true] %s22
      %28 = dma.hbm_to_vmem [thread:$0]  %s21, 512, %s23, [#allocation3], 128, 128, 8
    $region9: #{tpu_custom_call.1} parent=1 // pred_fallthru
      _
    // Predicated region
    $region10: #{tpu_custom_call.1} parent=1 // pred_check
      _
    $region11: #{tpu_custom_call.1} parent=1 // pred_check_branch
      %30 = sbr.rel (0) target = $region13
    $region12: #{tpu_custom_call.1} parent=1 // pred_region
      _
    $region13: #{tpu_custom_call.1} parent=1 // pred_fallthru
      _
    // Predicated region
    $region14: #{tpu_custom_call.1} parent=1 // pred_check
      _
    $region15: #{tpu_custom_call.1} parent=1 // pred_check_branch
      %32 = sbr.rel (0) target = $region17
    $region16: #{tpu_custom_call.1} parent=1 // pred_region
      _
    $region17: #{tpu_custom_call.1} parent=1 // pred_fallthru
      _
    // Predicated region
    $region18: #{tpu_custom_call.1} parent=1 // pred_check
      _
    $region19: #{tpu_custom_call.1} parent=1 // pred_check_branch
      %34 = sbr.rel (0) target = $region21
    $region20: #{tpu_custom_call.1} parent=1 // pred_region
      %36 = dma.done [#allocation3], 512
    $region21: #{tpu_custom_call.1} parent=1 // pred_fallthru
      _
    %v37 = vld [vmem:[%s0] sm:$0xff]
    %v38 = vadd.f32 %v37, 1e-06
    %v39 = vld [vmem:[#allocation2] sm:$0xff]
    %v40 = vld [vmem:[#allocation2 + $0x8] sm:$0xff]
    %v41 = vld [vmem:[#allocation2 + $0x10] sm:$0xff]
    %v42 = vld [vmem:[#allocation2 + $0x18] sm:$0xff]
    %v43 = vmul.f32 %v38, %v38
    %vm44 = vcmask 261120
    %v45 = vsel %vm44, %v43, 0.0
    %46 = vadd.xlane.f32.xlu0 %v45
    %v47 = vpop.xlane.xlu0 %46
    %v49 = vsel %vm44, %v38, 0
    %51 = vmatpush.msra.mxu0 0.0
    %52 = vmatpush.msra.mxu0 0.0
    %53 = vmatpush.msra.mxu0 0.0
    %54 = vmatpush.msra.mxu0 0.0
    %55 = vmatpush.msra.mxu0 0.0
    %56 = vmatpush.msra.mxu0 0.0
    %57 = vmatpush.msra.mxu0 0.0
    %58 = vmatpush.msra.mxu0 0.0
    %59 = vmatpush.msra.mxu0 0.0
    %60 = vmatpush.msra.mxu0 0.0
    %61 = vmatpush.msra.mxu0 0.0
    %62 = vmatpush.msra.mxu0 0.0
    %63 = vmatpush.msra.mxu0 %v42
    %64 = vmatpush.msra.mxu0 %v41
    %65 = vmatpush.msra.mxu0 %v40
    %66 = vmatpush.msra.mxu0 %v39
    %67 = vmatmul.f32.gmra.mxu0 %v49
    %v68 = vpop.f32.mrf.mxu0
    %v69 = vadd.f32 0.0, %v68
    %70 = vdwg.mxu0
    %v71 = vld [vmem:[%s2] sm:$0x1]
    %v73 = vperm.slane %v71, 0
    %v75 = vadd.f32 %v47, %v73
    %v76 = vmul.f32 %v69, 2.0
    %v77 = vsub.f32 %v75, %v76
    %v78 = vmax.f32 %v77, 0.0
    %v79 = vrsqrt.pop %v78
    %v80 = vmul.f32 %v79, %v78
    %v81 = vmul.f32 %v80, %v79
    %v82 = vmul.f32 0.5, %v81
    %v83 = vsub.f32 1.5, %v82
    %v84 = vmul.f32 %v79, %v83
    %v85 = vmul.f32 %v78, %v84
    %vm86 = vcmp.eq.f32.partialorder %v78, inf
    %v87 = vsel %vm86, %v78, %v85
    %vm88 = vcmp.eq.f32.partialorder %v78, 0.0
    %v89 = vand.u32 %v78, 2147483648
    %v90 = vsel %vm88, %v89, %v87
    %v91 = vsub.f32 0.0, %v90
    %92 = vst [vmem:[#allocation5] sm:$0xff] %v91
    %93 = vmax.xlane.f32.xlu0 %v91
    %v94 = vpop.xlane.xlu0 %93
    %v95 = vsub.f32 %v91, %v94
    %v96 = vmul.f32 %v95, 1.442695
    %v97 = vpow.pop %v96
    %98 = vadd.xlane.f32.xlu0 %v97
    %v99 = vpop.xlane.xlu0 %98
    %v100 = vlog2.pop %v99
    %v101 = vmul.f32 %v100, 0.6931472
    %v102 = vadd.f32 %v94, %v101
    %v103 = vlaneseq
    %v104 = vand.u32 %v103, 127
    %v105 = vld [vmem:[%s3] sm:$0xff]
    %106 = vset.pattern.permute.xlu0 0
    %107 = vperm.xlu0 %106, %v105
    %v108 = vpop.permute.xlu0 %107
    %vm109 = vcmp.eq.s32.totalorder %v104, %v108
    %v110 = vsel %vm109, 1, 0
    %v111 = vcvt.s32.f32 %v110
    %v112 = vmul.f32 %v91, %v111
    %113 = vadd.xlane.f32.xlu0 %v112
    %v114 = vpop.xlane.xlu0 %113
    %v115 = vsub.f32 %v102, %v114
    %vm116 = vcmask 7168
    %v117 = vsel %vm116, %v115, 0.0
    %118 = vadd.xlane.f32.xlu0 %v117
    %v119 = vpop.xlane.xlu0 %118
    %v120 = vrot.slane %v119, 4
    %v121 = vadd.f32 %v119, %v120
    %v122 = vrot.slane %v121, 2
    %v123 = vadd.f32 %v121, %v122
    %v124 = vrot.slane %v123, 1
    %v125 = vadd.f32 %v123, %v124
    %s126 = vtos %v125
    %v127 = vstv %s126
    %128 = vst [vmem:[#allocation6] sm:$0xff] %v127
    // Predicated region
    $region22: #{tpu_custom_call.1} parent=1 // pred_check
      _
    $region23: #{tpu_custom_call.1} parent=1 // pred_check_branch
      %130 = sbr.rel (0) target = $region25
    $region24: #{tpu_custom_call.1} parent=1 // pred_region
      %132 = vsyncadd [#allocation4], 0
      %s134 = sshll.u32 [#allocation5], 4
      %s135 = int_to_ptr.vmem [resolvable:$true] %s134
      %s136 = sshll.u32 %s4, 4
      %s137 = int_to_ptr.hbm [resolvable:$true] %s136
      %139 = dma.vmem_to_hbm [thread:$0]  %s135, 128, %s137, [#allocation4]
    $region25: #{tpu_custom_call.1} parent=1 // pred_fallthru
      _
    // Predicated region
    $region26: #{tpu_custom_call.1} parent=1 // pred_check
      _
    $region27: #{tpu_custom_call.1} parent=1 // pred_check_branch
      %141 = sbr.rel (0) target = $region29
    $region28: #{tpu_custom_call.1} parent=1 // pred_region
      %143 = vsyncadd [#allocation7], 0
      %s145 = sshll.u32 [#allocation6], 4
      %s146 = int_to_ptr.vmem [resolvable:$true] %s145
      %s147 = sshll.u32 %s5, 4
      %s148 = int_to_ptr.hbm [resolvable:$true] %s147
      %150 = dma.vmem_to_hbm [thread:$0]  %s146, 128, %s148, [#allocation7]
    $region29: #{tpu_custom_call.1} parent=1 // pred_fallthru
      _
    // Predicated region
    $region30: #{tpu_custom_call.1} parent=1 // pred_check
      _
    $region31: #{tpu_custom_call.1} parent=1 // pred_check_branch
      %152 = sbr.rel (0) target = $region33
    $region32: #{tpu_custom_call.1} parent=1 // pred_region
      %154 = dma.done [#allocation4], 128
    $region33: #{tpu_custom_call.1} parent=1 // pred_fallthru
      _
    // Predicated region
    $region34: #{tpu_custom_call.1} parent=1 // pred_check
      _
    $region35: #{tpu_custom_call.1} parent=1 // pred_check_branch
      %156 = sbr.rel (0) target = $region37
    $region36: #{tpu_custom_call.1} parent=1 // pred_region
      %158 = dma.done [#allocation7], 128
    $region37: #{tpu_custom_call.1} parent=1 // pred_fallthru
      _
    %159 = vsyncpa [#allocation3], 1
    %160 = vsyncpa [#allocation4], 1
    %161 = vsyncpa [#allocation7], 1

// kernel: tpu_custom_call.1
$region0: #{tpu_custom_call.1}
  #allocation0 [shape = 'u32[]', space=smem, size = 0x4, offset = 0x4, fixed_abs, tag = 'smem constant byte address 0x4 - core index']
  #allocation1 [shape = 'u32[72,128]{1,0:T(1,128)}', space=vmem, size = 0x9000, scoped, tag = 'internal scratch']
  %s0 = inlined_call_operand.vmem [shape: f32[8,32], index: 0, kind: input, shape index: {}]
  %s1 = inlined_call_operand.hbm [shape: f32[32,128], index: 1, kind: input, shape index: {}]
  %s2 = inlined_call_operand.vmem [shape: f32[1,128], index: 2, kind: input, shape index: {}]
  %s3 = inlined_call_operand.vmem [shape: s32[8,1], index: 3, kind: input, shape index: {}]
  %s4 = inlined_call_operand.hbm [shape: f32[8,128], index: 4, kind: output, shape index: {0}]
  %s5 = inlined_call_operand.hbm [shape: f32[1,8,128], index: 5, kind: output, shape index: {1}]
  %6 = xla_tuple %s4, %s5
  %s7 = sld [smem:[#allocation0]]
  $region38: #{tpu_custom_call.1} parent=0
    _
  %s9 = ssub.s32 1, %s7
  %s10 = scalar_select 0, %s9, %s7
  $region1: #{tpu_custom_call.1} parent=0
    #allocation2 [shape = 'u8[16384]{0}', space=vmem, size = 0x4000, scoped, tag = 'input window, operand 1, single buffered']
    #allocation3 [shape = 's32[1]{0}', space=sflag, size = 0x4, scoped, tag = 'scoped memory for tpu_custom_call.1']
    #allocation4 [shape = 's32[1]{0}', space=sflag, size = 0x4, scoped, tag = 'scoped memory for tpu_custom_call.1']
    #allocation5 [shape = 'u8[4096]{0}', space=vmem, size = 0x1000, scoped, tag = 'output window, operand 0, single buffered']
    #allocation6 [shape = 'u8[4096]{0}', space=vmem, size = 0x1000, scoped, tag = 'output window, operand 1, single buffered']
    #allocation7 [shape = 's32[1]{0}', space=sflag, size = 0x4, scoped, tag = 'scoped memory for tpu_custom_call.1']
    %11 = vsyncpa [#allocation3], 0
    %12 = vsyncpa [#allocation4], 0
    %13 = vsyncpa [#allocation7], 0
    // Predicated region
    $region2: #{tpu_custom_call.1} parent=1 // pred_check
      _
    $region3: #{tpu_custom_call.1} parent=1 // pred_check_branch
      %15 = sbr.rel (0) target = $region5
    $region4: #{tpu_custom_call.1} parent=1 // pred_region
      _
    $region5: #{tpu_custom_call.1} parent=1 // pred_fallthru
      _
    // Predicated region
    $region6: #{tpu_custom_call.1} parent=1 // pred_check
      _
    $region7: #{tpu_custom_call.1} parent=1 // pred_check_branch
      %17 = sbr.rel (0) target = $region9
    $region8: #{tpu_custom_call.1} parent=1 // pred_region
      %19 = vsyncadd [#allocation3], 0
      %s20 = sshll.u32 %s1, 4
      %s21 = int_to_ptr.hbm [resolvable:$true] %s20
      %s22 = sshll.u32 [#allocation2], 4
      %s23 = int_to_ptr.vmem [resolvable:$true] %s22
      %28 = dma.hbm_to_vmem [thread:$0]  %s21, 512, %s23, [#allocation3], 128, 128, 8
    $region9: #{tpu_custom_call.1} parent=1 // pred_fallthru
      _
    // Predicated region
    $region10: #{tpu_custom_call.1} parent=1 // pred_check
      _
    $region11: #{tpu_custom_call.1} parent=1 // pred_check_branch
      %30 = sbr.rel (0) target = $region13
    $region12: #{tpu_custom_call.1} parent=1 // pred_region
      _
    $region13: #{tpu_custom_call.1} parent=1 // pred_fallthru
      _
    // Predicated region
    $region14: #{tpu_custom_call.1} parent=1 // pred_check
      _
    $region15: #{tpu_custom_call.1} parent=1 // pred_check_branch
      %32 = sbr.rel (0) target = $region17
    $region16: #{tpu_custom_call.1} parent=1 // pred_region
      _
    $region17: #{tpu_custom_call.1} parent=1 // pred_fallthru
      _
    // Predicated region
    $region18: #{tpu_custom_call.1} parent=1 // pred_check
      _
    $region19: #{tpu_custom_call.1} parent=1 // pred_check_branch
      %34 = sbr.rel (0) target = $region21
    $region20: #{tpu_custom_call.1} parent=1 // pred_region
      %36 = dma.done [#allocation3], 512
    $region21: #{tpu_custom_call.1} parent=1 // pred_fallthru
      _
    %v37 = vld [vmem:[%s0] sm:$0xff]
    %v38 = vadd.f32 %v37, 1e-06
    %v39 = vld [vmem:[#allocation2] sm:$0xff]
    %v40 = vld [vmem:[#allocation2 + $0x8] sm:$0xff]
    %v41 = vld [vmem:[#allocation2 + $0x10] sm:$0xff]
    %v42 = vld [vmem:[#allocation2 + $0x18] sm:$0xff]
    %v43 = vmul.f32 %v38, %v38
    %vm44 = vcmask 261120
    %v45 = vsel %vm44, %v43, 0.0
    %46 = vadd.xlane.f32.xlu0 %v45
    %v47 = vpop.xlane.xlu0 %46
    %v49 = vsel %vm44, %v38, 0
    %51 = vmatpush.msra.mxu0 0.0
    %52 = vmatpush.msra.mxu0 0.0
    %53 = vmatpush.msra.mxu0 0.0
    %54 = vmatpush.msra.mxu0 0.0
    %55 = vmatpush.msra.mxu0 0.0
    %56 = vmatpush.msra.mxu0 0.0
    %57 = vmatpush.msra.mxu0 0.0
    %58 = vmatpush.msra.mxu0 0.0
    %59 = vmatpush.msra.mxu0 0.0
    %60 = vmatpush.msra.mxu0 0.0
    %61 = vmatpush.msra.mxu0 0.0
    %62 = vmatpush.msra.mxu0 0.0
    %63 = vmatpush.msra.mxu0 %v42
    %64 = vmatpush.msra.mxu0 %v41
    %65 = vmatpush.msra.mxu0 %v40
    %66 = vmatpush.msra.mxu0 %v39
    %67 = vmatmul.f32.gmra.mxu0 %v49
    %v68 = vpop.f32.mrf.mxu0
    %v69 = vadd.f32 0.0, %v68
    %70 = vdwg.mxu0
    %v71 = vld [vmem:[%s2] sm:$0x1]
    %v73 = vperm.slane %v71, 0
    %v75 = vadd.f32 %v47, %v73
    %v76 = vmul.f32 %v69, 2.0
    %v77 = vsub.f32 %v75, %v76
    %v78 = vmax.f32 %v77, 0.0
    %v79 = vrsqrt.pop %v78
    %v80 = vmul.f32 %v79, %v78
    %v81 = vmul.f32 %v80, %v79
    %v82 = vmul.f32 0.5, %v81
    %v83 = vsub.f32 1.5, %v82
    %v84 = vmul.f32 %v79, %v83
    %v85 = vmul.f32 %v78, %v84
    %vm86 = vcmp.eq.f32.partialorder %v78, inf
    %v87 = vsel %vm86, %v78, %v85
    %vm88 = vcmp.eq.f32.partialorder %v78, 0.0
    %v89 = vand.u32 %v78, 2147483648
    %v90 = vsel %vm88, %v89, %v87
    %v91 = vsub.f32 0.0, %v90
    %92 = vst [vmem:[#allocation5] sm:$0xff] %v91
    %93 = vmax.xlane.f32.xlu0 %v91
    %v94 = vpop.xlane.xlu0 %93
    %v95 = vsub.f32 %v91, %v94
    %v96 = vmul.f32 %v95, 1.442695
    %v97 = vpow.pop %v96
    %98 = vadd.xlane.f32.xlu0 %v97
    %v99 = vpop.xlane.xlu0 %98
    %v100 = vlog2.pop %v99
    %v101 = vmul.f32 %v100, 0.6931472
    %v102 = vadd.f32 %v94, %v101
    %v103 = vlaneseq
    %v104 = vand.u32 %v103, 127
    %v105 = vld [vmem:[%s3] sm:$0xff]
    %106 = vset.pattern.permute.xlu0 0
    %107 = vperm.xlu0 %106, %v105
    %v108 = vpop.permute.xlu0 %107
    %vm109 = vcmp.eq.s32.totalorder %v104, %v108
    %v110 = vsel %vm109, 1, 0
    %v111 = vcvt.s32.f32 %v110
    %v112 = vmul.f32 %v91, %v111
    %113 = vadd.xlane.f32.xlu0 %v112
    %v114 = vpop.xlane.xlu0 %113
    %v115 = vsub.f32 %v102, %v114
    %vm116 = vcmask 7168
    %v117 = vsel %vm116, %v115, 0.0
    %118 = vadd.xlane.f32.xlu0 %v117
    %v119 = vpop.xlane.xlu0 %118
    %v120 = vrot.slane %v119, 4
    %v121 = vadd.f32 %v119, %v120
    %v122 = vrot.slane %v121, 2
    %v123 = vadd.f32 %v121, %v122
    %v124 = vrot.slane %v123, 1
    %v125 = vadd.f32 %v123, %v124
    %s126 = vtos %v125
    %v127 = vstv %s126
    %128 = vst [vmem:[#allocation6] sm:$0xff] %v127
    // Predicated region
    $region22: #{tpu_custom_call.1} parent=1 // pred_check
      _
    $region23: #{tpu_custom_call.1} parent=1 // pred_check_branch
      %130 = sbr.rel (0) target = $region25
    $region24: #{tpu_custom_call.1} parent=1 // pred_region
      %132 = vsyncadd [#allocation4], 0
      %s134 = sshll.u32 [#allocation5], 4
      %s135 = int_to_ptr.vmem [resolvable:$true] %s134
      %s136 = sshll.u32 %s4, 4
      %s137 = int_to_ptr.hbm [resolvable:$true] %s136
      %139 = dma.vmem_to_hbm [thread:$0]  %s135, 128, %s137, [#allocation4]
    $region25: #{tpu_custom_call.1} parent=1 // pred_fallthru
      _
    // Predicated region
    $region26: #{tpu_custom_call.1} parent=1 // pred_check
      _
    $region27: #{tpu_custom_call.1} parent=1 // pred_check_branch
      %141 = sbr.rel (0) target = $region29
    $region28: #{tpu_custom_call.1} parent=1 // pred_region
      %143 = vsyncadd [#allocation7], 0
      %s145 = sshll.u32 [#allocation6], 4
      %s146 = int_to_ptr.vmem [resolvable:$true] %s145
      %s147 = sshll.u32 %s5, 4
      %s148 = int_to_ptr.hbm [resolvable:$true] %s147
      %150 = dma.vmem_to_hbm [thread:$0]  %s146, 128, %s148, [#allocation7]
    $region29: #{tpu_custom_call.1} parent=1 // pred_fallthru
      _
    // Predicated region
    $region30: #{tpu_custom_call.1} parent=1 // pred_check
      _
    $region31: #{tpu_custom_call.1} parent=1 // pred_check_branch
      %152 = sbr.rel (0) target = $region33
    $region32: #{tpu_custom_call.1} parent=1 // pred_region
      %154 = dma.done [#allocation4], 128
    $region33: #{tpu_custom_call.1} parent=1 // pred_fallthru
      _
    // Predicated region
    $region34: #{tpu_custom_call.1} parent=1 // pred_check
      _
    $region35: #{tpu_custom_call.1} parent=1 // pred_check_branch
      %156 = sbr.rel (0) target = $region37
    $region36: #{tpu_custom_call.1} parent=1 // pred_region
      %158 = dma.done [#allocation7], 128
    $region37: #{tpu_custom_call.1} parent=1 // pred_fallthru
      _
    %159 = vsyncpa [#allocation3], 1
    %160 = vsyncpa [#allocation4], 1
    %161 = vsyncpa [#allocation7], 1

</llo_original>
